<compile_context>
chip_gen: v6e
topology: v6e:2x2x1
jax: 0.10.0
libtpu: 0.0.40
codegen_flags: <defaults>
</compile_context>

<pallas_src>
import jax
import jax.numpy as jnp
from jax.experimental import pallas as pl
from jax.experimental.pallas import tpu as pltpu


def _cube_kernel(x_ref, o_ref):
    x = x_ref[...]
    # Computed in the input dtype (matches torch's x ** 3 semantics).
    # Per vreg this is 1 vld + 2 vmul + 1 vst -- far under every generation's
    # bundle budget, so the kernel body needs no further tuning.
    o_ref[...] = x * x * x


def _round_up(a: int, m: int) -> int:
    return ((a + m - 1) // m) * m


def _chip_params():
    """Generation-aware block-size / VMEM-limit / core-count heuristics."""
    kind = ""
    try:
        kind = jax.devices()[0].device_kind.lower()
    except Exception:  # pragma: no cover - be robust on exotic runtimes
        pass
    if "v7" in kind:
        # ~3.2 TB/s HBM per TC: bigger blocks amortize per-step overhead, and
        # 2 TCs share one pallas_call -> need >=2 grid steps to use both.
        return {"target_bytes": 8 << 20, "vmem_limit": 48 << 20, "num_tcs": 2}
    if "v6" in kind:
        return {"target_bytes": 4 << 20, "vmem_limit": 32 << 20, "num_tcs": 1}
    if ("v4" in kind) or ("v5p" in kind):
        # Megacore chips: conservative block size, but shard across both TCs.
        return {"target_bytes": 2 << 20, "vmem_limit": None, "num_tcs": 2}
    # v5e / unknown: 16 MiB scoped VMEM default -> keep blocks at 2 MiB so the
    # double-buffered in+out (~4x block bytes) fits without raising limits.
    return {"target_bytes": 2 << 20, "vmem_limit": None, "num_tcs": 1}


def _cube_2d(x2: jax.Array, *, donate: bool = False) -> jax.Array:
    """Run the Pallas cube kernel on a lane-dense (rows, C) slab (C % 128 == 0)."""
    rows, cols = x2.shape
    itemsize = jnp.dtype(x2.dtype).itemsize
    params = _chip_params()
    target_bytes = params["target_bytes"]
    num_tcs = params["num_tcs"]

    # Sublane packing multiple for this dtype: 8 (f32), 16 (bf16/f16), 32 (int8/fp8).
    sub = max(8, 32 // itemsize)

    slab_bytes = rows * cols * itemsize
    # Number of grid steps: enough that each block stays <= target_bytes, and
    # at least num_tcs (when the row count allows) so every TensorCore gets
    # work; blocks are kept balanced by rounding cdiv(rows, nblocks) up.
    nblocks = max(1, pl.cdiv(slab_bytes, target_bytes))
    if num_tcs > 1 and rows >= num_tcs * sub:
        nblocks = max(nblocks, num_tcs)
    tile_rows = _round_up(pl.cdiv(rows, nblocks), sub)
    tile_rows = min(tile_rows, rows)  # single full-extent block is always legal

    grid = (pl.cdiv(rows, tile_rows),)  # short last block is masked by Pallas

    n = rows * cols
    cost = pl.CostEstimate(
        flops=2 * n,
        transcendentals=0,
        bytes_accessed=2 * n * itemsize,
    )

    compiler_kwargs = {"dimension_semantics": ("parallel",)}
    if params["vmem_limit"] is not None:
        compiler_kwargs["vmem_limit_bytes"] = params["vmem_limit"]

    return pl.pallas_call(
        _cube_kernel,
        out_shape=jax.ShapeDtypeStruct((rows, cols), x2.dtype),
        grid_spec=pltpu.PrefetchScalarGridSpec(
            num_scalar_prefetch=0,
            grid=grid,
            in_specs=[pl.BlockSpec((tile_rows, cols), lambda i: (i, 0))],
            out_specs=pl.BlockSpec((tile_rows, cols), lambda i: (i, 0)),
        ),
        compiler_params=pltpu.CompilerParams(**compiler_kwargs),
        cost_estimate=cost,
        # Footprint win only (bytes moved are unchanged): alias in->out when
        # the caller actually donates the input buffer.
        input_output_aliases=({0: 0} if donate else {}),
    )(x2)


def cube(x: jax.Array, *, min_pallas_bytes: int = 256 * 1024,
         donate: bool = False) -> jax.Array:
    """Forward pass of Cube: elementwise x ** 3, exact shape/dtype preserved."""
    orig_shape = x.shape
    n = x.size
    if n == 0:
        return x

    itemsize = jnp.dtype(x.dtype).itemsize
    if n * itemsize < min_pallas_bytes:
        # Tiny tensors: XLA's fused elementwise beats the fixed pallas_call cost.
        return x * x * x

    x_flat = x.reshape(-1)  # contiguous flatten: no data movement

    # Fast (copy-free) path: pick the widest lane count that divides n exactly.
    for cols in (4096, 2048, 1024, 512, 256, 128):
        if n % cols == 0:
            y2 = _cube_2d(x_flat.reshape(n // cols, cols), donate=donate)
            return y2.reshape(orig_shape)

    # Ragged path (n not a multiple of 128): kernel on the 128-aligned prefix,
    # tiny (<128-element) tail in plain jnp.  Avoids the old whole-array
    # pad + slice, which tripled HBM traffic on this path.
    cols = 128
    n_body = (n // cols) * cols  # > 0 because n*itemsize >= min_pallas_bytes
    body = x_flat[:n_body].reshape(n_body // cols, cols)
    tail = x_flat[n_body:]
    y_body = _cube_2d(body).reshape(-1)
    y_tail = tail * tail * tail
    return jnp.concatenate([y_body, y_tail]).reshape(orig_shape)


if __name__ == "__main__":
    key = jax.random.PRNGKey(0)
    k0, k1, k2 = jax.random.split(key, 3)

    # Small activation-like input consistent with the module's forward
    # (8 KiB -> fused-jnp fallback path).
    x_small = jax.random.normal(k0, (2, 4, 16, 16), dtype=jnp.float32)
    y_small = jax.block_until_ready(cube(x_small))
    assert y_small.shape == x_small.shape and y_small.dtype == x_small.dtype
    assert jnp.allclose(y_small, x_small ** 3, rtol=1e-6, atol=1e-6)

    # Scalar case from the original example: X = [3.0] -> 27.0.
    x_scalar = jnp.array([3.0], dtype=jnp.float32)
    y_scalar = jax.block_until_ready(cube(x_scalar))
    assert jnp.allclose(y_scalar, jnp.array([27.0]), rtol=1e-6, atol=1e-6)

    # Pallas multi-block path with a masked short last block:
    # n = 573440, cols=4096, rows=140 -> >=2 balanced grid steps.
    x_big = jax.random.normal(k1, (5, 7, 128, 128), dtype=jnp.float32)
    y_big = jax.block_until_ready(cube(x_big))
    assert jnp.allclose(y_big, x_big ** 3, rtol=1e-6, atol=1e-6)

    # Ragged path above the small-input threshold: aligned-prefix kernel + jnp tail.
    x_rag = jax.random.normal(k2, (128 * 1024 + 77,), dtype=jnp.float32)
    y_rag = jax.block_until_ready(cube(x_rag))
    assert y_rag.shape == x_rag.shape
    assert jnp.allclose(y_rag, x_rag ** 3, rtol=1e-6, atol=1e-6)

    # TODO(synk): the custom double-backward (CubeFunctionBackward) is autograd
    # plumbing; only the forward x**3 is implemented here (JAX autodiff of
    # x*x*x reproduces the same first/second derivatives).

    print("KERNEL_OK")
</pallas_src>

<mosaic_0001>
module attributes {stable_mosaic.version = 11 : i64} {
  func.func @_cube_kernel(%arg0: i32, %arg1: memref<72x4096xf32, #tpu.memory_space<vmem>>, %arg2: memref<72x4096xf32, #tpu.memory_space<vmem>>) attributes {dimension_semantics = [#tpu.dimension_semantics<parallel>], iteration_bounds = array<i64: 2>, scalar_prefetch = 0 : i64, scratch_operands = 0 : i64, tpu.core_type = #tpu.core_type<tc>, window_params = [{transform_indices = @transform_0, window_bounds = array<i64: 72, 4096>}, {transform_indices = @transform_1, window_bounds = array<i64: 72, 4096>}]} {
    %c0 = arith.constant 0 : index
    %c0_0 = arith.constant 0 : index
    %0 = vector.load %arg1[%c0, %c0_0] : memref<72x4096xf32, #tpu.memory_space<vmem>>, vector<72x4096xf32>
    %1 = arith.mulf %0, %0 : vector<72x4096xf32>
    %2 = arith.mulf %1, %0 : vector<72x4096xf32>
    %c0_1 = arith.constant 0 : index
    %c0_2 = arith.constant 0 : index
    %3 = vector.load %arg2[%c0_1, %c0_2] : memref<72x4096xf32, #tpu.memory_space<vmem>>, vector<72x4096xf32>
    tpu.vector_store %arg2[%c0_1, %c0_2], %2 {strides = array<i32>} : memref<72x4096xf32, #tpu.memory_space<vmem>>, vector<72x4096xf32>,
    return
  }
  func.func @transform_0(%arg0: i32) -> (i32, i32) {
    %c0_i32 = arith.constant 0 : i32
    %c0_i32_0 = arith.constant 0 : i32
    return %arg0, %c0_i32 : i32, i32
  }
  func.func @transform_1(%arg0: i32) -> (i32, i32) {
    %c0_i32 = arith.constant 0 : i32
    %c0_i32_0 = arith.constant 0 : i32
    return %arg0, %c0_i32 : i32, i32
  }
}

</mosaic_0001>

<llo_original>
// kernel: tpu_custom_call.1
$region0: #{tpu_custom_call.1}
  #allocation0 [shape = 'u32[]', space=smem, size = 0x4, offset = 0x4, fixed_abs, tag = 'smem constant byte address 0x4 - core index']
  #allocation1 [shape = 'u32[144,128]{1,0:T(1,128)}', space=vmem, size = 0x12000, scoped, tag = 'internal scratch']
  %s0 = inlined_call_operand.hbm [shape: f32[140,4096], index: 0, kind: input, shape index: {}]
  %s1 = inlined_call_operand.hbm [shape: f32[140,4096], index: 1, kind: output, shape index: {}]
  %s2 = sld [smem:[#allocation0]]
  $region41: #{tpu_custom_call.1} parent=0
    _
  %s4 = ssub.s32 1, %s2
  %s5 = scalar_select 0, %s4, %s2
  $region1: #{tpu_custom_call.1} parent=0
    #allocation2 [shape = 'u8[2359296]{0}', space=vmem, size = 0x240000, scoped, tag = 'input window, operand 0']
    #allocation3 [shape = 's32[2]{0}', space=sflag, size = 0x8, scoped, tag = 'scoped memory for tpu_custom_call.1']
    #allocation4 [shape = 's32[2]{0}', space=sflag, size = 0x8, scoped, tag = 'scoped memory for tpu_custom_call.1']
    #allocation5 [shape = 'u8[2359296]{0}', space=vmem, size = 0x240000, scoped, tag = 'output window, operand 0']
    %6 = vsyncpa [#allocation3], 0
    %s7 = scalar_lea.sflag [#allocation3], 1
    %8 = vsyncpa %s7, 0
    %9 = vsyncpa [#allocation4], 0
    %s10 = scalar_lea.sflag [#allocation4], 1
    %11 = vsyncpa %s10, 0
    loop: start=0, step=1, limit=4
    $region2: #{tpu_custom_call.1} parent=1 // loop_pre_header
      _
    $region3: #{tpu_custom_call.1} parent=1 // loop_header
      %s13 = sphi 0, %s17
      %p14 = scmp.ge.s32.totalorder %s13, 4
      %s23 = sphi 0, %s25
      %s26 = sphi 0, %s23
      %s27 = sphi 0, %s26
      %s43 = sphi 0, %s27
      %s49 = sphi 0, %s51
      %s52 = sphi 0, %s49
      %s53 = sphi 0, %s52
      %s69 = sphi 0, %s53
    $region4: #{tpu_custom_call.1} parent=1 // loop_header_branch
      %16 = sbr.rel (%p14) target = $region8
    $region5: #{tpu_custom_call.1} parent=1 // loop_body
      %s18 = ssub.s32 %s13, 1
      %s19 = ssub.s32 %s13, 2
      %s20 = sadd.s32 %s13, 1
      %s21 = ssub.s32 %s13, %s20
      %p22 = scmp.eq.s32.totalorder %s21, 0
      %s24 = sadd.s32 %s23, 1
      %s25 = scalar_select %p22, %s23, %s24
      %p28 = pneg %p22
      %p29 = scmp.eq.s32.totalorder %s13, 1
      %p30 = por %p28, %p29
      %p31 = scmp.ne.s32.totalorder %s23, %s26
      %p32 = scmp.eq.s32.totalorder %s13, 0
      %p33 = por %p31, %p32
      %p34 = scmp.ne.s32.totalorder %s23, %s26
      %p35 = scmp.eq.s32.totalorder %s18, 1
      %p36 = por %p34, %p35
      %p37 = scmp.ne.s32.totalorder %s26, %s27
      %p38 = scmp.eq.s32.totalorder %s18, 0
      %p39 = por %p37, %p38
      %p40 = scmp.ne.s32.totalorder %s26, %s27
      %p41 = scmp.eq.s32.totalorder %s19, 1
      %p42 = por %p40, %p41
      %p44 = scmp.ne.s32.totalorder %s27, %s43
      %p45 = scmp.eq.s32.totalorder %s19, 0
      %p46 = por %p44, %p45
      %s47 = ssub.s32 %s13, %s20
      %p48 = scmp.eq.s32.totalorder %s47, 0
      %s50 = sadd.s32 %s49, 1
      %s51 = scalar_select %p48, %s49, %s50
      %p54 = pneg %p48
      %p55 = scmp.eq.s32.totalorder %s13, 1
      %p56 = por %p54, %p55
      %p57 = scmp.ne.s32.totalorder %s49, %s52
      %p58 = scmp.eq.s32.totalorder %s13, 0
      %p59 = por %p57, %p58
      %p60 = scmp.ne.s32.totalorder %s49, %s52
      %p61 = scmp.eq.s32.totalorder %s18, 1
      %p62 = por %p60, %p61
      %p63 = scmp.ne.s32.totalorder %s52, %s53
      %p64 = scmp.eq.s32.totalorder %s18, 0
      %p65 = por %p63, %p64
      %p66 = scmp.ne.s32.totalorder %s52, %s53
      %p67 = scmp.eq.s32.totalorder %s19, 1
      %p68 = por %p66, %p67
      %p70 = scmp.ne.s32.totalorder %s53, %s69
      %p71 = scmp.eq.s32.totalorder %s19, 0
      %p72 = por %p70, %p71
      %p73 = scmp.le.s32.totalorder 1, %s13
      %p74 = scmp.lt.s32.totalorder %s13, 3
      %p75 = pnand %p73, %p74
      %p76 = pneg %p75
      // Predicated region
      $region9: #{tpu_custom_call.1} parent=5 // pred_check
        _
      $region10: #{tpu_custom_call.1} parent=5 // pred_check_branch
        %78 = sbr.rel (%p75) target = $region12
      $region11: #{tpu_custom_call.1} parent=5 // pred_region
        %s79 = ssub.s32 %s13, 1
      $region12: #{tpu_custom_call.1} parent=5 // pred_fallthru
        _
      %p80 = scmp.lt.s32.totalorder %s13, 2
      // Predicated region
      $region13: #{tpu_custom_call.1} parent=5 // pred_check
        %p81 = pneg %p80
      $region14: #{tpu_custom_call.1} parent=5 // pred_check_branch
        %83 = sbr.rel (%p81) target = $region16
      $region15: #{tpu_custom_call.1} parent=5 // pred_region
        // Predicated region
        $region17: #{tpu_custom_call.1} parent=15 // pred_check
          %p84 = pneg %p33
        $region18: #{tpu_custom_call.1} parent=15 // pred_check_branch
          %86 = sbr.rel (%p84) target = $region20
        $region19: #{tpu_custom_call.1} parent=15 // pred_region
          %s87 = sand.u32 %s23, 1
          %s88 = scalar_lea.sflag [#allocation3], %s87
          %s89 = sand.u32 %s23, 1
          %s90 = smul.addr %s89, 2304
          %s91 = scalar_lea.vmem [#allocation2], %s90
          %s92 = smul.u32 9, %s13
          %s94 = ssub.s32 36864, 36864
          %95 = vsyncadd %s88, %s94
          %s96 = smul.addr %s92, 32
          %s97 = smul.addr %s96, 128
          %s98 = scalar_lea.hbm %s0, %s97
          %s99 = sshll.u32 %s91, 4
          %s100 = int_to_ptr.vmem [resolvable:$true] %s99
          %105 = dma.hbm_to_vmem [thread:$0]  %s98, 36864, %s100, %s88, 4096, 4096, 256
        $region20: #{tpu_custom_call.1} parent=15 // pred_fallthru
          _
      $region16: #{tpu_custom_call.1} parent=5 // pred_fallthru
        _
      %p106 = scmp.le.s32.totalorder 1, %s13
      %p107 = scmp.lt.s32.totalorder %s13, 3
      %p108 = pnand %p106, %p107
      %p109 = pneg %p108
      // Predicated region
      $region21: #{tpu_custom_call.1} parent=5 // pred_check
        _
      $region22: #{tpu_custom_call.1} parent=5 // pred_check_branch
        %111 = sbr.rel (%p108) target = $region24
      $region23: #{tpu_custom_call.1} parent=5 // pred_region
        %s112 = ssub.s32 %s13, 1
        %s113 = sand.u32 %s26, 1
        %s114 = scalar_lea.sflag [#allocation3], %s113
        %s115 = sand.u32 %s26, 1
        %s116 = smul.addr %s115, 2304
        %s117 = scalar_lea.vmem [#allocation2], %s116
        // Predicated region
        $region25: #{tpu_custom_call.1} parent=23 // pred_check
          %p118 = pneg %p39
        $region26: #{tpu_custom_call.1} parent=23 // pred_check_branch
          %120 = sbr.rel (%p118) target = $region28
        $region27: #{tpu_custom_call.1} parent=23 // pred_region
          %121 = dma.done %s114, 36864
        $region28: #{tpu_custom_call.1} parent=23 // pred_fallthru
          _
        %s122 = sand.u32 %s26, 1
        %s123 = scalar_lea.sflag [#allocation3], %s122
        %s124 = sand.u32 %s26, 1
        %s125 = smul.addr %s124, 2304
        %s126 = scalar_lea.vmem [#allocation2], %s125
        %p127 = pneg %p39
        %p128 = pneg %p36
        %p129 = pneg %p65
        %p130 = pneg %p62
        %s131 = sand.u32 %s52, 1
        %s132 = scalar_lea.sflag [#allocation4], %s131
        %s133 = sand.u32 %s52, 1
        %s134 = smul.addr %s133, 2304
        %s135 = scalar_lea.vmem [#allocation5], %s134
        %s136 = smul.u32 9, %s18
        %s137 = smul.u32 9, %s18
        %v138 = vld [vmem:[%s117] sm:$0xff]
        %v139 = vld [vmem:[%s117 + $0x8] sm:$0xff]
        %v140 = vld [vmem:[%s117 + $0x10] sm:$0xff]
        %v141 = vld [vmem:[%s117 + $0x18] sm:$0xff]
        %v142 = vld [vmem:[%s117 + $0x20] sm:$0xff]
        %v143 = vld [vmem:[%s117 + $0x28] sm:$0xff]
        %v144 = vld [vmem:[%s117 + $0x30] sm:$0xff]
        %v145 = vld [vmem:[%s117 + $0x38] sm:$0xff]
        %v146 = vld [vmem:[%s117 + $0x40] sm:$0xff]
        %v147 = vld [vmem:[%s117 + $0x48] sm:$0xff]
        %v148 = vld [vmem:[%s117 + $0x50] sm:$0xff]
        %v149 = vld [vmem:[%s117 + $0x58] sm:$0xff]
        %v150 = vld [vmem:[%s117 + $0x60] sm:$0xff]
        %v151 = vld [vmem:[%s117 + $0x68] sm:$0xff]
        %v152 = vld [vmem:[%s117 + $0x70] sm:$0xff]
        %v153 = vld [vmem:[%s117 + $0x78] sm:$0xff]
        %v154 = vld [vmem:[%s117 + $0x80] sm:$0xff]
        %v155 = vld [vmem:[%s117 + $0x88] sm:$0xff]
        %v156 = vld [vmem:[%s117 + $0x90] sm:$0xff]
        %v157 = vld [vmem:[%s117 + $0x98] sm:$0xff]
        %v158 = vld [vmem:[%s117 + $0xa0] sm:$0xff]
        %v159 = vld [vmem:[%s117 + $0xa8] sm:$0xff]
        %v160 = vld [vmem:[%s117 + $0xb0] sm:$0xff]
        %v161 = vld [vmem:[%s117 + $0xb8] sm:$0xff]
        %v162 = vld [vmem:[%s117 + $0xc0] sm:$0xff]
        %v163 = vld [vmem:[%s117 + $0xc8] sm:$0xff]
        %v164 = vld [vmem:[%s117 + $0xd0] sm:$0xff]
        %v165 = vld [vmem:[%s117 + $0xd8] sm:$0xff]
        %v166 = vld [vmem:[%s117 + $0xe0] sm:$0xff]
        %v167 = vld [vmem:[%s117 + $0xe8] sm:$0xff]
        %v168 = vld [vmem:[%s117 + $0xf0] sm:$0xff]
        %v169 = vld [vmem:[%s117 + $0xf8] sm:$0xff]
        %v170 = vld [vmem:[%s117 + $0x100] sm:$0xff]
        %v171 = vld [vmem:[%s117 + $0x108] sm:$0xff]
        %v172 = vld [vmem:[%s117 + $0x110] sm:$0xff]
        %v173 = vld [vmem:[%s117 + $0x118] sm:$0xff]
        %v174 = vld [vmem:[%s117 + $0x120] sm:$0xff]
        %v175 = vld [vmem:[%s117 + $0x128] sm:$0xff]
        %v176 = vld [vmem:[%s117 + $0x130] sm:$0xff]
        %v177 = vld [vmem:[%s117 + $0x138] sm:$0xff]
        %v178 = vld [vmem:[%s117 + $0x140] sm:$0xff]
        %v179 = vld [vmem:[%s117 + $0x148] sm:$0xff]
        %v180 = vld [vmem:[%s117 + $0x150] sm:$0xff]
        %v181 = vld [vmem:[%s117 + $0x158] sm:$0xff]
        %v182 = vld [vmem:[%s117 + $0x160] sm:$0xff]
        %v183 = vld [vmem:[%s117 + $0x168] sm:$0xff]
        %v184 = vld [vmem:[%s117 + $0x170] sm:$0xff]
        %v185 = vld [vmem:[%s117 + $0x178] sm:$0xff]
        %v186 = vld [vmem:[%s117 + $0x180] sm:$0xff]
        %v187 = vld [vmem:[%s117 + $0x188] sm:$0xff]
        %v188 = vld [vmem:[%s117 + $0x190] sm:$0xff]
        %v189 = vld [vmem:[%s117 + $0x198] sm:$0xff]
        %v190 = vld [vmem:[%s117 + $0x1a0] sm:$0xff]
        %v191 = vld [vmem:[%s117 + $0x1a8] sm:$0xff]
        %v192 = vld [vmem:[%s117 + $0x1b0] sm:$0xff]
        %v193 = vld [vmem:[%s117 + $0x1b8] sm:$0xff]
        %v194 = vld [vmem:[%s117 + $0x1c0] sm:$0xff]
        %v195 = vld [vmem:[%s117 + $0x1c8] sm:$0xff]
        %v196 = vld [vmem:[%s117 + $0x1d0] sm:$0xff]
        %v197 = vld [vmem:[%s117 + $0x1d8] sm:$0xff]
        %v198 = vld [vmem:[%s117 + $0x1e0] sm:$0xff]
        %v199 = vld [vmem:[%s117 + $0x1e8] sm:$0xff]
        %v200 = vld [vmem:[%s117 + $0x1f0] sm:$0xff]
        %v201 = vld [vmem:[%s117 + $0x1f8] sm:$0xff]
        %v202 = vld [vmem:[%s117 + $0x200] sm:$0xff]
        %v203 = vld [vmem:[%s117 + $0x208] sm:$0xff]
        %v204 = vld [vmem:[%s117 + $0x210] sm:$0xff]
        %v205 = vld [vmem:[%s117 + $0x218] sm:$0xff]
        %v206 = vld [vmem:[%s117 + $0x220] sm:$0xff]
        %v207 = vld [vmem:[%s117 + $0x228] sm:$0xff]
        %v208 = vld [vmem:[%s117 + $0x230] sm:$0xff]
        %v209 = vld [vmem:[%s117 + $0x238] sm:$0xff]
        %v210 = vld [vmem:[%s117 + $0x240] sm:$0xff]
        %v211 = vld [vmem:[%s117 + $0x248] sm:$0xff]
        %v212 = vld [vmem:[%s117 + $0x250] sm:$0xff]
        %v213 = vld [vmem:[%s117 + $0x258] sm:$0xff]
        %v214 = vld [vmem:[%s117 + $0x260] sm:$0xff]
        %v215 = vld [vmem:[%s117 + $0x268] sm:$0xff]
        %v216 = vld [vmem:[%s117 + $0x270] sm:$0xff]
        %v217 = vld [vmem:[%s117 + $0x278] sm:$0xff]
        %v218 = vld [vmem:[%s117 + $0x280] sm:$0xff]
        %v219 = vld [vmem:[%s117 + $0x288] sm:$0xff]
        %v220 = vld [vmem:[%s117 + $0x290] sm:$0xff]
        %v221 = vld [vmem:[%s117 + $0x298] sm:$0xff]
        %v222 = vld [vmem:[%s117 + $0x2a0] sm:$0xff]
        %v223 = vld [vmem:[%s117 + $0x2a8] sm:$0xff]
        %v224 = vld [vmem:[%s117 + $0x2b0] sm:$0xff]
        %v225 = vld [vmem:[%s117 + $0x2b8] sm:$0xff]
        %v226 = vld [vmem:[%s117 + $0x2c0] sm:$0xff]
        %v227 = vld [vmem:[%s117 + $0x2c8] sm:$0xff]
        %v228 = vld [vmem:[%s117 + $0x2d0] sm:$0xff]
        %v229 = vld [vmem:[%s117 + $0x2d8] sm:$0xff]
        %v230 = vld [vmem:[%s117 + $0x2e0] sm:$0xff]
        %v231 = vld [vmem:[%s117 + $0x2e8] sm:$0xff]
        %v232 = vld [vmem:[%s117 + $0x2f0] sm:$0xff]
        %v233 = vld [vmem:[%s117 + $0x2f8] sm:$0xff]
        %v234 = vld [vmem:[%s117 + $0x300] sm:$0xff]
        %v235 = vld [vmem:[%s117 + $0x308] sm:$0xff]
        %v236 = vld [vmem:[%s117 + $0x310] sm:$0xff]
        %v237 = vld [vmem:[%s117 + $0x318] sm:$0xff]
        %v238 = vld [vmem:[%s117 + $0x320] sm:$0xff]
        %v239 = vld [vmem:[%s117 + $0x328] sm:$0xff]
        %v240 = vld [vmem:[%s117 + $0x330] sm:$0xff]
        %v241 = vld [vmem:[%s117 + $0x338] sm:$0xff]
        %v242 = vld [vmem:[%s117 + $0x340] sm:$0xff]
        %v243 = vld [vmem:[%s117 + $0x348] sm:$0xff]
        %v244 = vld [vmem:[%s117 + $0x350] sm:$0xff]
        %v245 = vld [vmem:[%s117 + $0x358] sm:$0xff]
        %v246 = vld [vmem:[%s117 + $0x360] sm:$0xff]
        %v247 = vld [vmem:[%s117 + $0x368] sm:$0xff]
        %v248 = vld [vmem:[%s117 + $0x370] sm:$0xff]
        %v249 = vld [vmem:[%s117 + $0x378] sm:$0xff]
        %v250 = vld [vmem:[%s117 + $0x380] sm:$0xff]
        %v251 = vld [vmem:[%s117 + $0x388] sm:$0xff]
        %v252 = vld [vmem:[%s117 + $0x390] sm:$0xff]
        %v253 = vld [vmem:[%s117 + $0x398] sm:$0xff]
        %v254 = vld [vmem:[%s117 + $0x3a0] sm:$0xff]
        %v255 = vld [vmem:[%s117 + $0x3a8] sm:$0xff]
        %v256 = vld [vmem:[%s117 + $0x3b0] sm:$0xff]
        %v257 = vld [vmem:[%s117 + $0x3b8] sm:$0xff]
        %v258 = vld [vmem:[%s117 + $0x3c0] sm:$0xff]
        %v259 = vld [vmem:[%s117 + $0x3c8] sm:$0xff]
        %v260 = vld [vmem:[%s117 + $0x3d0] sm:$0xff]
        %v261 = vld [vmem:[%s117 + $0x3d8] sm:$0xff]
        %v262 = vld [vmem:[%s117 + $0x3e0] sm:$0xff]
        %v263 = vld [vmem:[%s117 + $0x3e8] sm:$0xff]
        %v264 = vld [vmem:[%s117 + $0x3f0] sm:$0xff]
        %v265 = vld [vmem:[%s117 + $0x3f8] sm:$0xff]
        %v266 = vld [vmem:[%s117 + $0x400] sm:$0xff]
        %v267 = vld [vmem:[%s117 + $0x408] sm:$0xff]
        %v268 = vld [vmem:[%s117 + $0x410] sm:$0xff]
        %v269 = vld [vmem:[%s117 + $0x418] sm:$0xff]
        %v270 = vld [vmem:[%s117 + $0x420] sm:$0xff]
        %v271 = vld [vmem:[%s117 + $0x428] sm:$0xff]
        %v272 = vld [vmem:[%s117 + $0x430] sm:$0xff]
        %v273 = vld [vmem:[%s117 + $0x438] sm:$0xff]
        %v274 = vld [vmem:[%s117 + $0x440] sm:$0xff]
        %v275 = vld [vmem:[%s117 + $0x448] sm:$0xff]
        %v276 = vld [vmem:[%s117 + $0x450] sm:$0xff]
        %v277 = vld [vmem:[%s117 + $0x458] sm:$0xff]
        %v278 = vld [vmem:[%s117 + $0x460] sm:$0xff]
        %v279 = vld [vmem:[%s117 + $0x468] sm:$0xff]
        %v280 = vld [vmem:[%s117 + $0x470] sm:$0xff]
        %v281 = vld [vmem:[%s117 + $0x478] sm:$0xff]
        %v282 = vld [vmem:[%s117 + $0x480] sm:$0xff]
        %v283 = vld [vmem:[%s117 + $0x488] sm:$0xff]
        %v284 = vld [vmem:[%s117 + $0x490] sm:$0xff]
        %v285 = vld [vmem:[%s117 + $0x498] sm:$0xff]
        %v286 = vld [vmem:[%s117 + $0x4a0] sm:$0xff]
        %v287 = vld [vmem:[%s117 + $0x4a8] sm:$0xff]
        %v288 = vld [vmem:[%s117 + $0x4b0] sm:$0xff]
        %v289 = vld [vmem:[%s117 + $0x4b8] sm:$0xff]
        %v290 = vld [vmem:[%s117 + $0x4c0] sm:$0xff]
        %v291 = vld [vmem:[%s117 + $0x4c8] sm:$0xff]
        %v292 = vld [vmem:[%s117 + $0x4d0] sm:$0xff]
        %v293 = vld [vmem:[%s117 + $0x4d8] sm:$0xff]
        %v294 = vld [vmem:[%s117 + $0x4e0] sm:$0xff]
        %v295 = vld [vmem:[%s117 + $0x4e8] sm:$0xff]
        %v296 = vld [vmem:[%s117 + $0x4f0] sm:$0xff]
        %v297 = vld [vmem:[%s117 + $0x4f8] sm:$0xff]
        %v298 = vld [vmem:[%s117 + $0x500] sm:$0xff]
        %v299 = vld [vmem:[%s117 + $0x508] sm:$0xff]
        %v300 = vld [vmem:[%s117 + $0x510] sm:$0xff]
        %v301 = vld [vmem:[%s117 + $0x518] sm:$0xff]
        %v302 = vld [vmem:[%s117 + $0x520] sm:$0xff]
        %v303 = vld [vmem:[%s117 + $0x528] sm:$0xff]
        %v304 = vld [vmem:[%s117 + $0x530] sm:$0xff]
        %v305 = vld [vmem:[%s117 + $0x538] sm:$0xff]
        %v306 = vld [vmem:[%s117 + $0x540] sm:$0xff]
        %v307 = vld [vmem:[%s117 + $0x548] sm:$0xff]
        %v308 = vld [vmem:[%s117 + $0x550] sm:$0xff]
        %v309 = vld [vmem:[%s117 + $0x558] sm:$0xff]
        %v310 = vld [vmem:[%s117 + $0x560] sm:$0xff]
        %v311 = vld [vmem:[%s117 + $0x568] sm:$0xff]
        %v312 = vld [vmem:[%s117 + $0x570] sm:$0xff]
        %v313 = vld [vmem:[%s117 + $0x578] sm:$0xff]
        %v314 = vld [vmem:[%s117 + $0x580] sm:$0xff]
        %v315 = vld [vmem:[%s117 + $0x588] sm:$0xff]
        %v316 = vld [vmem:[%s117 + $0x590] sm:$0xff]
        %v317 = vld [vmem:[%s117 + $0x598] sm:$0xff]
        %v318 = vld [vmem:[%s117 + $0x5a0] sm:$0xff]
        %v319 = vld [vmem:[%s117 + $0x5a8] sm:$0xff]
        %v320 = vld [vmem:[%s117 + $0x5b0] sm:$0xff]
        %v321 = vld [vmem:[%s117 + $0x5b8] sm:$0xff]
        %v322 = vld [vmem:[%s117 + $0x5c0] sm:$0xff]
        %v323 = vld [vmem:[%s117 + $0x5c8] sm:$0xff]
        %v324 = vld [vmem:[%s117 + $0x5d0] sm:$0xff]
        %v325 = vld [vmem:[%s117 + $0x5d8] sm:$0xff]
        %v326 = vld [vmem:[%s117 + $0x5e0] sm:$0xff]
        %v327 = vld [vmem:[%s117 + $0x5e8] sm:$0xff]
        %v328 = vld [vmem:[%s117 + $0x5f0] sm:$0xff]
        %v329 = vld [vmem:[%s117 + $0x5f8] sm:$0xff]
        %v330 = vld [vmem:[%s117 + $0x600] sm:$0xff]
        %v331 = vld [vmem:[%s117 + $0x608] sm:$0xff]
        %v332 = vld [vmem:[%s117 + $0x610] sm:$0xff]
        %v333 = vld [vmem:[%s117 + $0x618] sm:$0xff]
        %v334 = vld [vmem:[%s117 + $0x620] sm:$0xff]
        %v335 = vld [vmem:[%s117 + $0x628] sm:$0xff]
        %v336 = vld [vmem:[%s117 + $0x630] sm:$0xff]
        %v337 = vld [vmem:[%s117 + $0x638] sm:$0xff]
        %v338 = vld [vmem:[%s117 + $0x640] sm:$0xff]
        %v339 = vld [vmem:[%s117 + $0x648] sm:$0xff]
        %v340 = vld [vmem:[%s117 + $0x650] sm:$0xff]
        %v341 = vld [vmem:[%s117 + $0x658] sm:$0xff]
        %v342 = vld [vmem:[%s117 + $0x660] sm:$0xff]
        %v343 = vld [vmem:[%s117 + $0x668] sm:$0xff]
        %v344 = vld [vmem:[%s117 + $0x670] sm:$0xff]
        %v345 = vld [vmem:[%s117 + $0x678] sm:$0xff]
        %v346 = vld [vmem:[%s117 + $0x680] sm:$0xff]
        %v347 = vld [vmem:[%s117 + $0x688] sm:$0xff]
        %v348 = vld [vmem:[%s117 + $0x690] sm:$0xff]
        %v349 = vld [vmem:[%s117 + $0x698] sm:$0xff]
        %v350 = vld [vmem:[%s117 + $0x6a0] sm:$0xff]
        %v351 = vld [vmem:[%s117 + $0x6a8] sm:$0xff]
        %v352 = vld [vmem:[%s117 + $0x6b0] sm:$0xff]
        %v353 = vld [vmem:[%s117 + $0x6b8] sm:$0xff]
        %v354 = vld [vmem:[%s117 + $0x6c0] sm:$0xff]
        %v355 = vld [vmem:[%s117 + $0x6c8] sm:$0xff]
        %v356 = vld [vmem:[%s117 + $0x6d0] sm:$0xff]
        %v357 = vld [vmem:[%s117 + $0x6d8] sm:$0xff]
        %v358 = vld [vmem:[%s117 + $0x6e0] sm:$0xff]
        %v359 = vld [vmem:[%s117 + $0x6e8] sm:$0xff]
        %v360 = vld [vmem:[%s117 + $0x6f0] sm:$0xff]
        %v361 = vld [vmem:[%s117 + $0x6f8] sm:$0xff]
        %v362 = vld [vmem:[%s117 + $0x700] sm:$0xff]
        %v363 = vld [vmem:[%s117 + $0x708] sm:$0xff]
        %v364 = vld [vmem:[%s117 + $0x710] sm:$0xff]
        %v365 = vld [vmem:[%s117 + $0x718] sm:$0xff]
        %v366 = vld [vmem:[%s117 + $0x720] sm:$0xff]
        %v367 = vld [vmem:[%s117 + $0x728] sm:$0xff]
        %v368 = vld [vmem:[%s117 + $0x730] sm:$0xff]
        %v369 = vld [vmem:[%s117 + $0x738] sm:$0xff]
        %v370 = vld [vmem:[%s117 + $0x740] sm:$0xff]
        %v371 = vld [vmem:[%s117 + $0x748] sm:$0xff]
        %v372 = vld [vmem:[%s117 + $0x750] sm:$0xff]
        %v373 = vld [vmem:[%s117 + $0x758] sm:$0xff]
        %v374 = vld [vmem:[%s117 + $0x760] sm:$0xff]
        %v375 = vld [vmem:[%s117 + $0x768] sm:$0xff]
        %v376 = vld [vmem:[%s117 + $0x770] sm:$0xff]
        %v377 = vld [vmem:[%s117 + $0x778] sm:$0xff]
        %v378 = vld [vmem:[%s117 + $0x780] sm:$0xff]
        %v379 = vld [vmem:[%s117 + $0x788] sm:$0xff]
        %v380 = vld [vmem:[%s117 + $0x790] sm:$0xff]
        %v381 = vld [vmem:[%s117 + $0x798] sm:$0xff]
        %v382 = vld [vmem:[%s117 + $0x7a0] sm:$0xff]
        %v383 = vld [vmem:[%s117 + $0x7a8] sm:$0xff]
        %v384 = vld [vmem:[%s117 + $0x7b0] sm:$0xff]
        %v385 = vld [vmem:[%s117 + $0x7b8] sm:$0xff]
        %v386 = vld [vmem:[%s117 + $0x7c0] sm:$0xff]
        %v387 = vld [vmem:[%s117 + $0x7c8] sm:$0xff]
        %v388 = vld [vmem:[%s117 + $0x7d0] sm:$0xff]
        %v389 = vld [vmem:[%s117 + $0x7d8] sm:$0xff]
        %v390 = vld [vmem:[%s117 + $0x7e0] sm:$0xff]
        %v391 = vld [vmem:[%s117 + $0x7e8] sm:$0xff]
        %v392 = vld [vmem:[%s117 + $0x7f0] sm:$0xff]
        %v393 = vld [vmem:[%s117 + $0x7f8] sm:$0xff]
        %v394 = vld [vmem:[%s117 + $0x800] sm:$0xff]
        %v395 = vld [vmem:[%s117 + $0x808] sm:$0xff]
        %v396 = vld [vmem:[%s117 + $0x810] sm:$0xff]
        %v397 = vld [vmem:[%s117 + $0x818] sm:$0xff]
        %v398 = vld [vmem:[%s117 + $0x820] sm:$0xff]
        %v399 = vld [vmem:[%s117 + $0x828] sm:$0xff]
        %v400 = vld [vmem:[%s117 + $0x830] sm:$0xff]
        %v401 = vld [vmem:[%s117 + $0x838] sm:$0xff]
        %v402 = vld [vmem:[%s117 + $0x840] sm:$0xff]
        %v403 = vld [vmem:[%s117 + $0x848] sm:$0xff]
        %v404 = vld [vmem:[%s117 + $0x850] sm:$0xff]
        %v405 = vld [vmem:[%s117 + $0x858] sm:$0xff]
        %v406 = vld [vmem:[%s117 + $0x860] sm:$0xff]
        %v407 = vld [vmem:[%s117 + $0x868] sm:$0xff]
        %v408 = vld [vmem:[%s117 + $0x870] sm:$0xff]
        %v409 = vld [vmem:[%s117 + $0x878] sm:$0xff]
        %v410 = vld [vmem:[%s117 + $0x880] sm:$0xff]
        %v411 = vld [vmem:[%s117 + $0x888] sm:$0xff]
        %v412 = vld [vmem:[%s117 + $0x890] sm:$0xff]
        %v413 = vld [vmem:[%s117 + $0x898] sm:$0xff]
        %v414 = vld [vmem:[%s117 + $0x8a0] sm:$0xff]
        %v415 = vld [vmem:[%s117 + $0x8a8] sm:$0xff]
        %v416 = vld [vmem:[%s117 + $0x8b0] sm:$0xff]
        %v417 = vld [vmem:[%s117 + $0x8b8] sm:$0xff]
        %v418 = vld [vmem:[%s117 + $0x8c0] sm:$0xff]
        %v419 = vld [vmem:[%s117 + $0x8c8] sm:$0xff]
        %v420 = vld [vmem:[%s117 + $0x8d0] sm:$0xff]
        %v421 = vld [vmem:[%s117 + $0x8d8] sm:$0xff]
        %v422 = vld [vmem:[%s117 + $0x8e0] sm:$0xff]
        %v423 = vld [vmem:[%s117 + $0x8e8] sm:$0xff]
        %v424 = vld [vmem:[%s117 + $0x8f0] sm:$0xff]
        %v425 = vld [vmem:[%s117 + $0x8f8] sm:$0xff]
        %v426 = vmul.f32 %v138, %v138
        %v427 = vmul.f32 %v139, %v139
        %v428 = vmul.f32 %v140, %v140
        %v429 = vmul.f32 %v141, %v141
        %v430 = vmul.f32 %v142, %v142
        %v431 = vmul.f32 %v143, %v143
        %v432 = vmul.f32 %v144, %v144
        %v433 = vmul.f32 %v145, %v145
        %v434 = vmul.f32 %v146, %v146
        %v435 = vmul.f32 %v147, %v147
        %v436 = vmul.f32 %v148, %v148
        %v437 = vmul.f32 %v149, %v149
        %v438 = vmul.f32 %v150, %v150
        %v439 = vmul.f32 %v151, %v151
        %v440 = vmul.f32 %v152, %v152
        %v441 = vmul.f32 %v153, %v153
        %v442 = vmul.f32 %v154, %v154
        %v443 = vmul.f32 %v155, %v155
        %v444 = vmul.f32 %v156, %v156
        %v445 = vmul.f32 %v157, %v157
        %v446 = vmul.f32 %v158, %v158
        %v447 = vmul.f32 %v159, %v159
        %v448 = vmul.f32 %v160, %v160
        %v449 = vmul.f32 %v161, %v161
        %v450 = vmul.f32 %v162, %v162
        %v451 = vmul.f32 %v163, %v163
        %v452 = vmul.f32 %v164, %v164
        %v453 = vmul.f32 %v165, %v165
        %v454 = vmul.f32 %v166, %v166
        %v455 = vmul.f32 %v167, %v167
        %v456 = vmul.f32 %v168, %v168
        %v457 = vmul.f32 %v169, %v169
        %v458 = vmul.f32 %v170, %v170
        %v459 = vmul.f32 %v171, %v171
        %v460 = vmul.f32 %v172, %v172
        %v461 = vmul.f32 %v173, %v173
        %v462 = vmul.f32 %v174, %v174
        %v463 = vmul.f32 %v175, %v175
        %v464 = vmul.f32 %v176, %v176
        %v465 = vmul.f32 %v177, %v177
        %v466 = vmul.f32 %v178, %v178
        %v467 = vmul.f32 %v179, %v179
        %v468 = vmul.f32 %v180, %v180
        %v469 = vmul.f32 %v181, %v181
        %v470 = vmul.f32 %v182, %v182
        %v471 = vmul.f32 %v183, %v183
        %v472 = vmul.f32 %v184, %v184
        %v473 = vmul.f32 %v185, %v185
        %v474 = vmul.f32 %v186, %v186
        %v475 = vmul.f32 %v187, %v187
        %v476 = vmul.f32 %v188, %v188
        %v477 = vmul.f32 %v189, %v189
        %v478 = vmul.f32 %v190, %v190
        %v479 = vmul.f32 %v191, %v191
        %v480 = vmul.f32 %v192, %v192
        %v481 = vmul.f32 %v193, %v193
        %v482 = vmul.f32 %v194, %v194
        %v483 = vmul.f32 %v195, %v195
        %v484 = vmul.f32 %v196, %v196
        %v485 = vmul.f32 %v197, %v197
        %v486 = vmul.f32 %v198, %v198
        %v487 = vmul.f32 %v199, %v199
        %v488 = vmul.f32 %v200, %v200
        %v489 = vmul.f32 %v201, %v201
        %v490 = vmul.f32 %v202, %v202
        %v491 = vmul.f32 %v203, %v203
        %v492 = vmul.f32 %v204, %v204
        %v493 = vmul.f32 %v205, %v205
        %v494 = vmul.f32 %v206, %v206
        %v495 = vmul.f32 %v207, %v207
        %v496 = vmul.f32 %v208, %v208
        %v497 = vmul.f32 %v209, %v209
        %v498 = vmul.f32 %v210, %v210
        %v499 = vmul.f32 %v211, %v211
        %v500 = vmul.f32 %v212, %v212
        %v501 = vmul.f32 %v213, %v213
        %v502 = vmul.f32 %v214, %v214
        %v503 = vmul.f32 %v215, %v215
        %v504 = vmul.f32 %v216, %v216
        %v505 = vmul.f32 %v217, %v217
        %v506 = vmul.f32 %v218, %v218
        %v507 = vmul.f32 %v219, %v219
        %v508 = vmul.f32 %v220, %v220
        %v509 = vmul.f32 %v221, %v221
        %v510 = vmul.f32 %v222, %v222
        %v511 = vmul.f32 %v223, %v223
        %v512 = vmul.f32 %v224, %v224
        %v513 = vmul.f32 %v225, %v225
        %v514 = vmul.f32 %v226, %v226
        %v515 = vmul.f32 %v227, %v227
        %v516 = vmul.f32 %v228, %v228
        %v517 = vmul.f32 %v229, %v229
        %v518 = vmul.f32 %v230, %v230
        %v519 = vmul.f32 %v231, %v231
        %v520 = vmul.f32 %v232, %v232
        %v521 = vmul.f32 %v233, %v233
        %v522 = vmul.f32 %v234, %v234
        %v523 = vmul.f32 %v235, %v235
        %v524 = vmul.f32 %v236, %v236
        %v525 = vmul.f32 %v237, %v237
        %v526 = vmul.f32 %v238, %v238
        %v527 = vmul.f32 %v239, %v239
        %v528 = vmul.f32 %v240, %v240
        %v529 = vmul.f32 %v241, %v241
        %v530 = vmul.f32 %v242, %v242
        %v531 = vmul.f32 %v243, %v243
        %v532 = vmul.f32 %v244, %v244
        %v533 = vmul.f32 %v245, %v245
        %v534 = vmul.f32 %v246, %v246
        %v535 = vmul.f32 %v247, %v247
        %v536 = vmul.f32 %v248, %v248
        %v537 = vmul.f32 %v249, %v249
        %v538 = vmul.f32 %v250, %v250
        %v539 = vmul.f32 %v251, %v251
        %v540 = vmul.f32 %v252, %v252
        %v541 = vmul.f32 %v253, %v253
        %v542 = vmul.f32 %v254, %v254
        %v543 = vmul.f32 %v255, %v255
        %v544 = vmul.f32 %v256, %v256
        %v545 = vmul.f32 %v257, %v257
        %v546 = vmul.f32 %v258, %v258
        %v547 = vmul.f32 %v259, %v259
        %v548 = vmul.f32 %v260, %v260
        %v549 = vmul.f32 %v261, %v261
        %v550 = vmul.f32 %v262, %v262
        %v551 = vmul.f32 %v263, %v263
        %v552 = vmul.f32 %v264, %v264
        %v553 = vmul.f32 %v265, %v265
        %v554 = vmul.f32 %v266, %v266
        %v555 = vmul.f32 %v267, %v267
        %v556 = vmul.f32 %v268, %v268
        %v557 = vmul.f32 %v269, %v269
        %v558 = vmul.f32 %v270, %v270
        %v559 = vmul.f32 %v271, %v271
        %v560 = vmul.f32 %v272, %v272
        %v561 = vmul.f32 %v273, %v273
        %v562 = vmul.f32 %v274, %v274
        %v563 = vmul.f32 %v275, %v275
        %v564 = vmul.f32 %v276, %v276
        %v565 = vmul.f32 %v277, %v277
        %v566 = vmul.f32 %v278, %v278
        %v567 = vmul.f32 %v279, %v279
        %v568 = vmul.f32 %v280, %v280
        %v569 = vmul.f32 %v281, %v281
        %v570 = vmul.f32 %v282, %v282
        %v571 = vmul.f32 %v283, %v283
        %v572 = vmul.f32 %v284, %v284
        %v573 = vmul.f32 %v285, %v285
        %v574 = vmul.f32 %v286, %v286
        %v575 = vmul.f32 %v287, %v287
        %v576 = vmul.f32 %v288, %v288
        %v577 = vmul.f32 %v289, %v289
        %v578 = vmul.f32 %v290, %v290
        %v579 = vmul.f32 %v291, %v291
        %v580 = vmul.f32 %v292, %v292
        %v581 = vmul.f32 %v293, %v293
        %v582 = vmul.f32 %v294, %v294
        %v583 = vmul.f32 %v295, %v295
        %v584 = vmul.f32 %v296, %v296
        %v585 = vmul.f32 %v297, %v297
        %v586 = vmul.f32 %v298, %v298
        %v587 = vmul.f32 %v299, %v299
        %v588 = vmul.f32 %v300, %v300
        %v589 = vmul.f32 %v301, %v301
        %v590 = vmul.f32 %v302, %v302
        %v591 = vmul.f32 %v303, %v303
        %v592 = vmul.f32 %v304, %v304
        %v593 = vmul.f32 %v305, %v305
        %v594 = vmul.f32 %v306, %v306
        %v595 = vmul.f32 %v307, %v307
        %v596 = vmul.f32 %v308, %v308
        %v597 = vmul.f32 %v309, %v309
        %v598 = vmul.f32 %v310, %v310
        %v599 = vmul.f32 %v311, %v311
        %v600 = vmul.f32 %v312, %v312
        %v601 = vmul.f32 %v313, %v313
        %v602 = vmul.f32 %v314, %v314
        %v603 = vmul.f32 %v315, %v315
        %v604 = vmul.f32 %v316, %v316
        %v605 = vmul.f32 %v317, %v317
        %v606 = vmul.f32 %v318, %v318
        %v607 = vmul.f32 %v319, %v319
        %v608 = vmul.f32 %v320, %v320
        %v609 = vmul.f32 %v321, %v321
        %v610 = vmul.f32 %v322, %v322
        %v611 = vmul.f32 %v323, %v323
        %v612 = vmul.f32 %v324, %v324
        %v613 = vmul.f32 %v325, %v325
        %v614 = vmul.f32 %v326, %v326
        %v615 = vmul.f32 %v327, %v327
        %v616 = vmul.f32 %v328, %v328
        %v617 = vmul.f32 %v329, %v329
        %v618 = vmul.f32 %v330, %v330
        %v619 = vmul.f32 %v331, %v331
        %v620 = vmul.f32 %v332, %v332
        %v621 = vmul.f32 %v333, %v333
        %v622 = vmul.f32 %v334, %v334
        %v623 = vmul.f32 %v335, %v335
        %v624 = vmul.f32 %v336, %v336
        %v625 = vmul.f32 %v337, %v337
        %v626 = vmul.f32 %v338, %v338
        %v627 = vmul.f32 %v339, %v339
        %v628 = vmul.f32 %v340, %v340
        %v629 = vmul.f32 %v341, %v341
        %v630 = vmul.f32 %v342, %v342
        %v631 = vmul.f32 %v343, %v343
        %v632 = vmul.f32 %v344, %v344
        %v633 = vmul.f32 %v345, %v345
        %v634 = vmul.f32 %v346, %v346
        %v635 = vmul.f32 %v347, %v347
        %v636 = vmul.f32 %v348, %v348
        %v637 = vmul.f32 %v349, %v349
        %v638 = vmul.f32 %v350, %v350
        %v639 = vmul.f32 %v351, %v351
        %v640 = vmul.f32 %v352, %v352
        %v641 = vmul.f32 %v353, %v353
        %v642 = vmul.f32 %v354, %v354
        %v643 = vmul.f32 %v355, %v355
        %v644 = vmul.f32 %v356, %v356
        %v645 = vmul.f32 %v357, %v357
        %v646 = vmul.f32 %v358, %v358
        %v647 = vmul.f32 %v359, %v359
        %v648 = vmul.f32 %v360, %v360
        %v649 = vmul.f32 %v361, %v361
        %v650 = vmul.f32 %v362, %v362
        %v651 = vmul.f32 %v363, %v363
        %v652 = vmul.f32 %v364, %v364
        %v653 = vmul.f32 %v365, %v365
        %v654 = vmul.f32 %v366, %v366
        %v655 = vmul.f32 %v367, %v367
        %v656 = vmul.f32 %v368, %v368
        %v657 = vmul.f32 %v369, %v369
        %v658 = vmul.f32 %v370, %v370
        %v659 = vmul.f32 %v371, %v371
        %v660 = vmul.f32 %v372, %v372
        %v661 = vmul.f32 %v373, %v373
        %v662 = vmul.f32 %v374, %v374
        %v663 = vmul.f32 %v375, %v375
        %v664 = vmul.f32 %v376, %v376
        %v665 = vmul.f32 %v377, %v377
        %v666 = vmul.f32 %v378, %v378
        %v667 = vmul.f32 %v379, %v379
        %v668 = vmul.f32 %v380, %v380
        %v669 = vmul.f32 %v381, %v381
        %v670 = vmul.f32 %v382, %v382
        %v671 = vmul.f32 %v383, %v383
        %v672 = vmul.f32 %v384, %v384
        %v673 = vmul.f32 %v385, %v385
        %v674 = vmul.f32 %v386, %v386
        %v675 = vmul.f32 %v387, %v387
        %v676 = vmul.f32 %v388, %v388
        %v677 = vmul.f32 %v389, %v389
        %v678 = vmul.f32 %v390, %v390
        %v679 = vmul.f32 %v391, %v391
        %v680 = vmul.f32 %v392, %v392
        %v681 = vmul.f32 %v393, %v393
        %v682 = vmul.f32 %v394, %v394
        %v683 = vmul.f32 %v395, %v395
        %v684 = vmul.f32 %v396, %v396
        %v685 = vmul.f32 %v397, %v397
        %v686 = vmul.f32 %v398, %v398
        %v687 = vmul.f32 %v399, %v399
        %v688 = vmul.f32 %v400, %v400
        %v689 = vmul.f32 %v401, %v401
        %v690 = vmul.f32 %v402, %v402
        %v691 = vmul.f32 %v403, %v403
        %v692 = vmul.f32 %v404, %v404
        %v693 = vmul.f32 %v405, %v405
        %v694 = vmul.f32 %v406, %v406
        %v695 = vmul.f32 %v407, %v407
        %v696 = vmul.f32 %v408, %v408
        %v697 = vmul.f32 %v409, %v409
        %v698 = vmul.f32 %v410, %v410
        %v699 = vmul.f32 %v411, %v411
        %v700 = vmul.f32 %v412, %v412
        %v701 = vmul.f32 %v413, %v413
        %v702 = vmul.f32 %v414, %v414
        %v703 = vmul.f32 %v415, %v415
        %v704 = vmul.f32 %v416, %v416
        %v705 = vmul.f32 %v417, %v417
        %v706 = vmul.f32 %v418, %v418
        %v707 = vmul.f32 %v419, %v419
        %v708 = vmul.f32 %v420, %v420
        %v709 = vmul.f32 %v421, %v421
        %v710 = vmul.f32 %v422, %v422
        %v711 = vmul.f32 %v423, %v423
        %v712 = vmul.f32 %v424, %v424
        %v713 = vmul.f32 %v425, %v425
        %v714 = vmul.f32 %v426, %v138
        %v715 = vmul.f32 %v427, %v139
        %v716 = vmul.f32 %v428, %v140
        %v717 = vmul.f32 %v429, %v141
        %v718 = vmul.f32 %v430, %v142
        %v719 = vmul.f32 %v431, %v143
        %v720 = vmul.f32 %v432, %v144
        %v721 = vmul.f32 %v433, %v145
        %v722 = vmul.f32 %v434, %v146
        %v723 = vmul.f32 %v435, %v147
        %v724 = vmul.f32 %v436, %v148
        %v725 = vmul.f32 %v437, %v149
        %v726 = vmul.f32 %v438, %v150
        %v727 = vmul.f32 %v439, %v151
        %v728 = vmul.f32 %v440, %v152
        %v729 = vmul.f32 %v441, %v153
        %v730 = vmul.f32 %v442, %v154
        %v731 = vmul.f32 %v443, %v155
        %v732 = vmul.f32 %v444, %v156
        %v733 = vmul.f32 %v445, %v157
        %v734 = vmul.f32 %v446, %v158
        %v735 = vmul.f32 %v447, %v159
        %v736 = vmul.f32 %v448, %v160
        %v737 = vmul.f32 %v449, %v161
        %v738 = vmul.f32 %v450, %v162
        %v739 = vmul.f32 %v451, %v163
        %v740 = vmul.f32 %v452, %v164
        %v741 = vmul.f32 %v453, %v165
        %v742 = vmul.f32 %v454, %v166
        %v743 = vmul.f32 %v455, %v167
        %v744 = vmul.f32 %v456, %v168
        %v745 = vmul.f32 %v457, %v169
        %v746 = vmul.f32 %v458, %v170
        %v747 = vmul.f32 %v459, %v171
        %v748 = vmul.f32 %v460, %v172
        %v749 = vmul.f32 %v461, %v173
        %v750 = vmul.f32 %v462, %v174
        %v751 = vmul.f32 %v463, %v175
        %v752 = vmul.f32 %v464, %v176
        %v753 = vmul.f32 %v465, %v177
        %v754 = vmul.f32 %v466, %v178
        %v755 = vmul.f32 %v467, %v179
        %v756 = vmul.f32 %v468, %v180
        %v757 = vmul.f32 %v469, %v181
        %v758 = vmul.f32 %v470, %v182
        %v759 = vmul.f32 %v471, %v183
        %v760 = vmul.f32 %v472, %v184
        %v761 = vmul.f32 %v473, %v185
        %v762 = vmul.f32 %v474, %v186
        %v763 = vmul.f32 %v475, %v187
        %v764 = vmul.f32 %v476, %v188
        %v765 = vmul.f32 %v477, %v189
        %v766 = vmul.f32 %v478, %v190
        %v767 = vmul.f32 %v479, %v191
        %v768 = vmul.f32 %v480, %v192
        %v769 = vmul.f32 %v481, %v193
        %v770 = vmul.f32 %v482, %v194
        %v771 = vmul.f32 %v483, %v195
        %v772 = vmul.f32 %v484, %v196
        %v773 = vmul.f32 %v485, %v197
        %v774 = vmul.f32 %v486, %v198
        %v775 = vmul.f32 %v487, %v199
        %v776 = vmul.f32 %v488, %v200
        %v777 = vmul.f32 %v489, %v201
        %v778 = vmul.f32 %v490, %v202
        %v779 = vmul.f32 %v491, %v203
        %v780 = vmul.f32 %v492, %v204
        %v781 = vmul.f32 %v493, %v205
        %v782 = vmul.f32 %v494, %v206
        %v783 = vmul.f32 %v495, %v207
        %v784 = vmul.f32 %v496, %v208
        %v785 = vmul.f32 %v497, %v209
        %v786 = vmul.f32 %v498, %v210
        %v787 = vmul.f32 %v499, %v211
        %v788 = vmul.f32 %v500, %v212
        %v789 = vmul.f32 %v501, %v213
        %v790 = vmul.f32 %v502, %v214
        %v791 = vmul.f32 %v503, %v215
        %v792 = vmul.f32 %v504, %v216
        %v793 = vmul.f32 %v505, %v217
        %v794 = vmul.f32 %v506, %v218
        %v795 = vmul.f32 %v507, %v219
        %v796 = vmul.f32 %v508, %v220
        %v797 = vmul.f32 %v509, %v221
        %v798 = vmul.f32 %v510, %v222
        %v799 = vmul.f32 %v511, %v223
        %v800 = vmul.f32 %v512, %v224
        %v801 = vmul.f32 %v513, %v225
        %v802 = vmul.f32 %v514, %v226
        %v803 = vmul.f32 %v515, %v227
        %v804 = vmul.f32 %v516, %v228
        %v805 = vmul.f32 %v517, %v229
        %v806 = vmul.f32 %v518, %v230
        %v807 = vmul.f32 %v519, %v231
        %v808 = vmul.f32 %v520, %v232
        %v809 = vmul.f32 %v521, %v233
        %v810 = vmul.f32 %v522, %v234
        %v811 = vmul.f32 %v523, %v235
        %v812 = vmul.f32 %v524, %v236
        %v813 = vmul.f32 %v525, %v237
        %v814 = vmul.f32 %v526, %v238
        %v815 = vmul.f32 %v527, %v239
        %v816 = vmul.f32 %v528, %v240
        %v817 = vmul.f32 %v529, %v241
        %v818 = vmul.f32 %v530, %v242
        %v819 = vmul.f32 %v531, %v243
        %v820 = vmul.f32 %v532, %v244
        %v821 = vmul.f32 %v533, %v245
        %v822 = vmul.f32 %v534, %v246
        %v823 = vmul.f32 %v535, %v247
        %v824 = vmul.f32 %v536, %v248
        %v825 = vmul.f32 %v537, %v249
        %v826 = vmul.f32 %v538, %v250
        %v827 = vmul.f32 %v539, %v251
        %v828 = vmul.f32 %v540, %v252
        %v829 = vmul.f32 %v541, %v253
        %v830 = vmul.f32 %v542, %v254
        %v831 = vmul.f32 %v543, %v255
        %v832 = vmul.f32 %v544, %v256
        %v833 = vmul.f32 %v545, %v257
        %v834 = vmul.f32 %v546, %v258
        %v835 = vmul.f32 %v547, %v259
        %v836 = vmul.f32 %v548, %v260
        %v837 = vmul.f32 %v549, %v261
        %v838 = vmul.f32 %v550, %v262
        %v839 = vmul.f32 %v551, %v263
        %v840 = vmul.f32 %v552, %v264
        %v841 = vmul.f32 %v553, %v265
        %v842 = vmul.f32 %v554, %v266
        %v843 = vmul.f32 %v555, %v267
        %v844 = vmul.f32 %v556, %v268
        %v845 = vmul.f32 %v557, %v269
        %v846 = vmul.f32 %v558, %v270
        %v847 = vmul.f32 %v559, %v271
        %v848 = vmul.f32 %v560, %v272
        %v849 = vmul.f32 %v561, %v273
        %v850 = vmul.f32 %v562, %v274
        %v851 = vmul.f32 %v563, %v275
        %v852 = vmul.f32 %v564, %v276
        %v853 = vmul.f32 %v565, %v277
        %v854 = vmul.f32 %v566, %v278
        %v855 = vmul.f32 %v567, %v279
        %v856 = vmul.f32 %v568, %v280
        %v857 = vmul.f32 %v569, %v281
        %v858 = vmul.f32 %v570, %v282
        %v859 = vmul.f32 %v571, %v283
        %v860 = vmul.f32 %v572, %v284
        %v861 = vmul.f32 %v573, %v285
        %v862 = vmul.f32 %v574, %v286
        %v863 = vmul.f32 %v575, %v287
        %v864 = vmul.f32 %v576, %v288
        %v865 = vmul.f32 %v577, %v289
        %v866 = vmul.f32 %v578, %v290
        %v867 = vmul.f32 %v579, %v291
        %v868 = vmul.f32 %v580, %v292
        %v869 = vmul.f32 %v581, %v293
        %v870 = vmul.f32 %v582, %v294
        %v871 = vmul.f32 %v583, %v295
        %v872 = vmul.f32 %v584, %v296
        %v873 = vmul.f32 %v585, %v297
        %v874 = vmul.f32 %v586, %v298
        %v875 = vmul.f32 %v587, %v299
        %v876 = vmul.f32 %v588, %v300
        %v877 = vmul.f32 %v589, %v301
        %v878 = vmul.f32 %v590, %v302
        %v879 = vmul.f32 %v591, %v303
        %v880 = vmul.f32 %v592, %v304
        %v881 = vmul.f32 %v593, %v305
        %v882 = vmul.f32 %v594, %v306
        %v883 = vmul.f32 %v595, %v307
        %v884 = vmul.f32 %v596, %v308
        %v885 = vmul.f32 %v597, %v309
        %v886 = vmul.f32 %v598, %v310
        %v887 = vmul.f32 %v599, %v311
        %v888 = vmul.f32 %v600, %v312
        %v889 = vmul.f32 %v601, %v313
        %v890 = vmul.f32 %v602, %v314
        %v891 = vmul.f32 %v603, %v315
        %v892 = vmul.f32 %v604, %v316
        %v893 = vmul.f32 %v605, %v317
        %v894 = vmul.f32 %v606, %v318
        %v895 = vmul.f32 %v607, %v319
        %v896 = vmul.f32 %v608, %v320
        %v897 = vmul.f32 %v609, %v321
        %v898 = vmul.f32 %v610, %v322
        %v899 = vmul.f32 %v611, %v323
        %v900 = vmul.f32 %v612, %v324
        %v901 = vmul.f32 %v613, %v325
        %v902 = vmul.f32 %v614, %v326
        %v903 = vmul.f32 %v615, %v327
        %v904 = vmul.f32 %v616, %v328
        %v905 = vmul.f32 %v617, %v329
        %v906 = vmul.f32 %v618, %v330
        %v907 = vmul.f32 %v619, %v331
        %v908 = vmul.f32 %v620, %v332
        %v909 = vmul.f32 %v621, %v333
        %v910 = vmul.f32 %v622, %v334
        %v911 = vmul.f32 %v623, %v335
        %v912 = vmul.f32 %v624, %v336
        %v913 = vmul.f32 %v625, %v337
        %v914 = vmul.f32 %v626, %v338
        %v915 = vmul.f32 %v627, %v339
        %v916 = vmul.f32 %v628, %v340
        %v917 = vmul.f32 %v629, %v341
        %v918 = vmul.f32 %v630, %v342
        %v919 = vmul.f32 %v631, %v343
        %v920 = vmul.f32 %v632, %v344
        %v921 = vmul.f32 %v633, %v345
        %v922 = vmul.f32 %v634, %v346
        %v923 = vmul.f32 %v635, %v347
        %v924 = vmul.f32 %v636, %v348
        %v925 = vmul.f32 %v637, %v349
        %v926 = vmul.f32 %v638, %v350
        %v927 = vmul.f32 %v639, %v351
        %v928 = vmul.f32 %v640, %v352
        %v929 = vmul.f32 %v641, %v353
        %v930 = vmul.f32 %v642, %v354
        %v931 = vmul.f32 %v643, %v355
        %v932 = vmul.f32 %v644, %v356
        %v933 = vmul.f32 %v645, %v357
        %v934 = vmul.f32 %v646, %v358
        %v935 = vmul.f32 %v647, %v359
        %v936 = vmul.f32 %v648, %v360
        %v937 = vmul.f32 %v649, %v361
        %v938 = vmul.f32 %v650, %v362
        %v939 = vmul.f32 %v651, %v363
        %v940 = vmul.f32 %v652, %v364
        %v941 = vmul.f32 %v653, %v365
        %v942 = vmul.f32 %v654, %v366
        %v943 = vmul.f32 %v655, %v367
        %v944 = vmul.f32 %v656, %v368
        %v945 = vmul.f32 %v657, %v369
        %v946 = vmul.f32 %v658, %v370
        %v947 = vmul.f32 %v659, %v371
        %v948 = vmul.f32 %v660, %v372
        %v949 = vmul.f32 %v661, %v373
        %v950 = vmul.f32 %v662, %v374
        %v951 = vmul.f32 %v663, %v375
        %v952 = vmul.f32 %v664, %v376
        %v953 = vmul.f32 %v665, %v377
        %v954 = vmul.f32 %v666, %v378
        %v955 = vmul.f32 %v667, %v379
        %v956 = vmul.f32 %v668, %v380
        %v957 = vmul.f32 %v669, %v381
        %v958 = vmul.f32 %v670, %v382
        %v959 = vmul.f32 %v671, %v383
        %v960 = vmul.f32 %v672, %v384
        %v961 = vmul.f32 %v673, %v385
        %v962 = vmul.f32 %v674, %v386
        %v963 = vmul.f32 %v675, %v387
        %v964 = vmul.f32 %v676, %v388
        %v965 = vmul.f32 %v677, %v389
        %v966 = vmul.f32 %v678, %v390
        %v967 = vmul.f32 %v679, %v391
        %v968 = vmul.f32 %v680, %v392
        %v969 = vmul.f32 %v681, %v393
        %v970 = vmul.f32 %v682, %v394
        %v971 = vmul.f32 %v683, %v395
        %v972 = vmul.f32 %v684, %v396
        %v973 = vmul.f32 %v685, %v397
        %v974 = vmul.f32 %v686, %v398
        %v975 = vmul.f32 %v687, %v399
        %v976 = vmul.f32 %v688, %v400
        %v977 = vmul.f32 %v689, %v401
        %v978 = vmul.f32 %v690, %v402
        %v979 = vmul.f32 %v691, %v403
        %v980 = vmul.f32 %v692, %v404
        %v981 = vmul.f32 %v693, %v405
        %v982 = vmul.f32 %v694, %v406
        %v983 = vmul.f32 %v695, %v407
        %v984 = vmul.f32 %v696, %v408
        %v985 = vmul.f32 %v697, %v409
        %v986 = vmul.f32 %v698, %v410
        %v987 = vmul.f32 %v699, %v411
        %v988 = vmul.f32 %v700, %v412
        %v989 = vmul.f32 %v701, %v413
        %v990 = vmul.f32 %v702, %v414
        %v991 = vmul.f32 %v703, %v415
        %v992 = vmul.f32 %v704, %v416
        %v993 = vmul.f32 %v705, %v417
        %v994 = vmul.f32 %v706, %v418
        %v995 = vmul.f32 %v707, %v419
        %v996 = vmul.f32 %v708, %v420
        %v997 = vmul.f32 %v709, %v421
        %v998 = vmul.f32 %v710, %v422
        %v999 = vmul.f32 %v711, %v423
        %v1000 = vmul.f32 %v712, %v424
        %v1001 = vmul.f32 %v713, %v425
        %1002 = vst [vmem:[%s135] sm:$0xff] %v714
        %1003 = vst [vmem:[%s135 + $0x8] sm:$0xff] %v715
        %1004 = vst [vmem:[%s135 + $0x10] sm:$0xff] %v716
        %1005 = vst [vmem:[%s135 + $0x18] sm:$0xff] %v717
        %1006 = vst [vmem:[%s135 + $0x20] sm:$0xff] %v718
        %1007 = vst [vmem:[%s135 + $0x28] sm:$0xff] %v719
        %1008 = vst [vmem:[%s135 + $0x30] sm:$0xff] %v720
        %1009 = vst [vmem:[%s135 + $0x38] sm:$0xff] %v721
        %1010 = vst [vmem:[%s135 + $0x40] sm:$0xff] %v722
        %1011 = vst [vmem:[%s135 + $0x48] sm:$0xff] %v723
        %1012 = vst [vmem:[%s135 + $0x50] sm:$0xff] %v724
        %1013 = vst [vmem:[%s135 + $0x58] sm:$0xff] %v725
        %1014 = vst [vmem:[%s135 + $0x60] sm:$0xff] %v726
        %1015 = vst [vmem:[%s135 + $0x68] sm:$0xff] %v727
        %1016 = vst [vmem:[%s135 + $0x70] sm:$0xff] %v728
        %1017 = vst [vmem:[%s135 + $0x78] sm:$0xff] %v729
        %1018 = vst [vmem:[%s135 + $0x80] sm:$0xff] %v730
        %1019 = vst [vmem:[%s135 + $0x88] sm:$0xff] %v731
        %1020 = vst [vmem:[%s135 + $0x90] sm:$0xff] %v732
        %1021 = vst [vmem:[%s135 + $0x98] sm:$0xff] %v733
        %1022 = vst [vmem:[%s135 + $0xa0] sm:$0xff] %v734
        %1023 = vst [vmem:[%s135 + $0xa8] sm:$0xff] %v735
        %1024 = vst [vmem:[%s135 + $0xb0] sm:$0xff] %v736
        %1025 = vst [vmem:[%s135 + $0xb8] sm:$0xff] %v737
        %1026 = vst [vmem:[%s135 + $0xc0] sm:$0xff] %v738
        %1027 = vst [vmem:[%s135 + $0xc8] sm:$0xff] %v739
        %1028 = vst [vmem:[%s135 + $0xd0] sm:$0xff] %v740
        %1029 = vst [vmem:[%s135 + $0xd8] sm:$0xff] %v741
        %1030 = vst [vmem:[%s135 + $0xe0] sm:$0xff] %v742
        %1031 = vst [vmem:[%s135 + $0xe8] sm:$0xff] %v743
        %1032 = vst [vmem:[%s135 + $0xf0] sm:$0xff] %v744
        %1033 = vst [vmem:[%s135 + $0xf8] sm:$0xff] %v745
        %1034 = vst [vmem:[%s135 + $0x100] sm:$0xff] %v746
        %1035 = vst [vmem:[%s135 + $0x108] sm:$0xff] %v747
        %1036 = vst [vmem:[%s135 + $0x110] sm:$0xff] %v748
        %1037 = vst [vmem:[%s135 + $0x118] sm:$0xff] %v749
        %1038 = vst [vmem:[%s135 + $0x120] sm:$0xff] %v750
        %1039 = vst [vmem:[%s135 + $0x128] sm:$0xff] %v751
        %1040 = vst [vmem:[%s135 + $0x130] sm:$0xff] %v752
        %1041 = vst [vmem:[%s135 + $0x138] sm:$0xff] %v753
        %1042 = vst [vmem:[%s135 + $0x140] sm:$0xff] %v754
        %1043 = vst [vmem:[%s135 + $0x148] sm:$0xff] %v755
        %1044 = vst [vmem:[%s135 + $0x150] sm:$0xff] %v756
        %1045 = vst [vmem:[%s135 + $0x158] sm:$0xff] %v757
        %1046 = vst [vmem:[%s135 + $0x160] sm:$0xff] %v758
        %1047 = vst [vmem:[%s135 + $0x168] sm:$0xff] %v759
        %1048 = vst [vmem:[%s135 + $0x170] sm:$0xff] %v760
        %1049 = vst [vmem:[%s135 + $0x178] sm:$0xff] %v761
        %1050 = vst [vmem:[%s135 + $0x180] sm:$0xff] %v762
        %1051 = vst [vmem:[%s135 + $0x188] sm:$0xff] %v763
        %1052 = vst [vmem:[%s135 + $0x190] sm:$0xff] %v764
        %1053 = vst [vmem:[%s135 + $0x198] sm:$0xff] %v765
        %1054 = vst [vmem:[%s135 + $0x1a0] sm:$0xff] %v766
        %1055 = vst [vmem:[%s135 + $0x1a8] sm:$0xff] %v767
        %1056 = vst [vmem:[%s135 + $0x1b0] sm:$0xff] %v768
        %1057 = vst [vmem:[%s135 + $0x1b8] sm:$0xff] %v769
        %1058 = vst [vmem:[%s135 + $0x1c0] sm:$0xff] %v770
        %1059 = vst [vmem:[%s135 + $0x1c8] sm:$0xff] %v771
        %1060 = vst [vmem:[%s135 + $0x1d0] sm:$0xff] %v772
        %1061 = vst [vmem:[%s135 + $0x1d8] sm:$0xff] %v773
        %1062 = vst [vmem:[%s135 + $0x1e0] sm:$0xff] %v774
        %1063 = vst [vmem:[%s135 + $0x1e8] sm:$0xff] %v775
        %1064 = vst [vmem:[%s135 + $0x1f0] sm:$0xff] %v776
        %1065 = vst [vmem:[%s135 + $0x1f8] sm:$0xff] %v777
        %1066 = vst [vmem:[%s135 + $0x200] sm:$0xff] %v778
        %1067 = vst [vmem:[%s135 + $0x208] sm:$0xff] %v779
        %1068 = vst [vmem:[%s135 + $0x210] sm:$0xff] %v780
        %1069 = vst [vmem:[%s135 + $0x218] sm:$0xff] %v781
        %1070 = vst [vmem:[%s135 + $0x220] sm:$0xff] %v782
        %1071 = vst [vmem:[%s135 + $0x228] sm:$0xff] %v783
        %1072 = vst [vmem:[%s135 + $0x230] sm:$0xff] %v784
        %1073 = vst [vmem:[%s135 + $0x238] sm:$0xff] %v785
        %1074 = vst [vmem:[%s135 + $0x240] sm:$0xff] %v786
        %1075 = vst [vmem:[%s135 + $0x248] sm:$0xff] %v787
        %1076 = vst [vmem:[%s135 + $0x250] sm:$0xff] %v788
        %1077 = vst [vmem:[%s135 + $0x258] sm:$0xff] %v789
        %1078 = vst [vmem:[%s135 + $0x260] sm:$0xff] %v790
        %1079 = vst [vmem:[%s135 + $0x268] sm:$0xff] %v791
        %1080 = vst [vmem:[%s135 + $0x270] sm:$0xff] %v792
        %1081 = vst [vmem:[%s135 + $0x278] sm:$0xff] %v793
        %1082 = vst [vmem:[%s135 + $0x280] sm:$0xff] %v794
        %1083 = vst [vmem:[%s135 + $0x288] sm:$0xff] %v795
        %1084 = vst [vmem:[%s135 + $0x290] sm:$0xff] %v796
        %1085 = vst [vmem:[%s135 + $0x298] sm:$0xff] %v797
        %1086 = vst [vmem:[%s135 + $0x2a0] sm:$0xff] %v798
        %1087 = vst [vmem:[%s135 + $0x2a8] sm:$0xff] %v799
        %1088 = vst [vmem:[%s135 + $0x2b0] sm:$0xff] %v800
        %1089 = vst [vmem:[%s135 + $0x2b8] sm:$0xff] %v801
        %1090 = vst [vmem:[%s135 + $0x2c0] sm:$0xff] %v802
        %1091 = vst [vmem:[%s135 + $0x2c8] sm:$0xff] %v803
        %1092 = vst [vmem:[%s135 + $0x2d0] sm:$0xff] %v804
        %1093 = vst [vmem:[%s135 + $0x2d8] sm:$0xff] %v805
        %1094 = vst [vmem:[%s135 + $0x2e0] sm:$0xff] %v806
        %1095 = vst [vmem:[%s135 + $0x2e8] sm:$0xff] %v807
        %1096 = vst [vmem:[%s135 + $0x2f0] sm:$0xff] %v808
        %1097 = vst [vmem:[%s135 + $0x2f8] sm:$0xff] %v809
        %1098 = vst [vmem:[%s135 + $0x300] sm:$0xff] %v810
        %1099 = vst [vmem:[%s135 + $0x308] sm:$0xff] %v811
        %1100 = vst [vmem:[%s135 + $0x310] sm:$0xff] %v812
        %1101 = vst [vmem:[%s135 + $0x318] sm:$0xff] %v813
        %1102 = vst [vmem:[%s135 + $0x320] sm:$0xff] %v814
        %1103 = vst [vmem:[%s135 + $0x328] sm:$0xff] %v815
        %1104 = vst [vmem:[%s135 + $0x330] sm:$0xff] %v816
        %1105 = vst [vmem:[%s135 + $0x338] sm:$0xff] %v817
        %1106 = vst [vmem:[%s135 + $0x340] sm:$0xff] %v818
        %1107 = vst [vmem:[%s135 + $0x348] sm:$0xff] %v819
        %1108 = vst [vmem:[%s135 + $0x350] sm:$0xff] %v820
        %1109 = vst [vmem:[%s135 + $0x358] sm:$0xff] %v821
        %1110 = vst [vmem:[%s135 + $0x360] sm:$0xff] %v822
        %1111 = vst [vmem:[%s135 + $0x368] sm:$0xff] %v823
        %1112 = vst [vmem:[%s135 + $0x370] sm:$0xff] %v824
        %1113 = vst [vmem:[%s135 + $0x378] sm:$0xff] %v825
        %1114 = vst [vmem:[%s135 + $0x380] sm:$0xff] %v826
        %1115 = vst [vmem:[%s135 + $0x388] sm:$0xff] %v827
        %1116 = vst [vmem:[%s135 + $0x390] sm:$0xff] %v828
        %1117 = vst [vmem:[%s135 + $0x398] sm:$0xff] %v829
        %1118 = vst [vmem:[%s135 + $0x3a0] sm:$0xff] %v830
        %1119 = vst [vmem:[%s135 + $0x3a8] sm:$0xff] %v831
        %1120 = vst [vmem:[%s135 + $0x3b0] sm:$0xff] %v832
        %1121 = vst [vmem:[%s135 + $0x3b8] sm:$0xff] %v833
        %1122 = vst [vmem:[%s135 + $0x3c0] sm:$0xff] %v834
        %1123 = vst [vmem:[%s135 + $0x3c8] sm:$0xff] %v835
        %1124 = vst [vmem:[%s135 + $0x3d0] sm:$0xff] %v836
        %1125 = vst [vmem:[%s135 + $0x3d8] sm:$0xff] %v837
        %1126 = vst [vmem:[%s135 + $0x3e0] sm:$0xff] %v838
        %1127 = vst [vmem:[%s135 + $0x3e8] sm:$0xff] %v839
        %1128 = vst [vmem:[%s135 + $0x3f0] sm:$0xff] %v840
        %1129 = vst [vmem:[%s135 + $0x3f8] sm:$0xff] %v841
        %1130 = vst [vmem:[%s135 + $0x400] sm:$0xff] %v842
        %1131 = vst [vmem:[%s135 + $0x408] sm:$0xff] %v843
        %1132 = vst [vmem:[%s135 + $0x410] sm:$0xff] %v844
        %1133 = vst [vmem:[%s135 + $0x418] sm:$0xff] %v845
        %1134 = vst [vmem:[%s135 + $0x420] sm:$0xff] %v846
        %1135 = vst [vmem:[%s135 + $0x428] sm:$0xff] %v847
        %1136 = vst [vmem:[%s135 + $0x430] sm:$0xff] %v848
        %1137 = vst [vmem:[%s135 + $0x438] sm:$0xff] %v849
        %1138 = vst [vmem:[%s135 + $0x440] sm:$0xff] %v850
        %1139 = vst [vmem:[%s135 + $0x448] sm:$0xff] %v851
        %1140 = vst [vmem:[%s135 + $0x450] sm:$0xff] %v852
        %1141 = vst [vmem:[%s135 + $0x458] sm:$0xff] %v853
        %1142 = vst [vmem:[%s135 + $0x460] sm:$0xff] %v854
        %1143 = vst [vmem:[%s135 + $0x468] sm:$0xff] %v855
        %1144 = vst [vmem:[%s135 + $0x470] sm:$0xff] %v856
        %1145 = vst [vmem:[%s135 + $0x478] sm:$0xff] %v857
        %1146 = vst [vmem:[%s135 + $0x480] sm:$0xff] %v858
        %1147 = vst [vmem:[%s135 + $0x488] sm:$0xff] %v859
        %1148 = vst [vmem:[%s135 + $0x490] sm:$0xff] %v860
        %1149 = vst [vmem:[%s135 + $0x498] sm:$0xff] %v861
        %1150 = vst [vmem:[%s135 + $0x4a0] sm:$0xff] %v862
        %1151 = vst [vmem:[%s135 + $0x4a8] sm:$0xff] %v863
        %1152 = vst [vmem:[%s135 + $0x4b0] sm:$0xff] %v864
        %1153 = vst [vmem:[%s135 + $0x4b8] sm:$0xff] %v865
        %1154 = vst [vmem:[%s135 + $0x4c0] sm:$0xff] %v866
        %1155 = vst [vmem:[%s135 + $0x4c8] sm:$0xff] %v867
        %1156 = vst [vmem:[%s135 + $0x4d0] sm:$0xff] %v868
        %1157 = vst [vmem:[%s135 + $0x4d8] sm:$0xff] %v869
        %1158 = vst [vmem:[%s135 + $0x4e0] sm:$0xff] %v870
        %1159 = vst [vmem:[%s135 + $0x4e8] sm:$0xff] %v871
        %1160 = vst [vmem:[%s135 + $0x4f0] sm:$0xff] %v872
        %1161 = vst [vmem:[%s135 + $0x4f8] sm:$0xff] %v873
        %1162 = vst [vmem:[%s135 + $0x500] sm:$0xff] %v874
        %1163 = vst [vmem:[%s135 + $0x508] sm:$0xff] %v875
        %1164 = vst [vmem:[%s135 + $0x510] sm:$0xff] %v876
        %1165 = vst [vmem:[%s135 + $0x518] sm:$0xff] %v877
        %1166 = vst [vmem:[%s135 + $0x520] sm:$0xff] %v878
        %1167 = vst [vmem:[%s135 + $0x528] sm:$0xff] %v879
        %1168 = vst [vmem:[%s135 + $0x530] sm:$0xff] %v880
        %1169 = vst [vmem:[%s135 + $0x538] sm:$0xff] %v881
        %1170 = vst [vmem:[%s135 + $0x540] sm:$0xff] %v882
        %1171 = vst [vmem:[%s135 + $0x548] sm:$0xff] %v883
        %1172 = vst [vmem:[%s135 + $0x550] sm:$0xff] %v884
        %1173 = vst [vmem:[%s135 + $0x558] sm:$0xff] %v885
        %1174 = vst [vmem:[%s135 + $0x560] sm:$0xff] %v886
        %1175 = vst [vmem:[%s135 + $0x568] sm:$0xff] %v887
        %1176 = vst [vmem:[%s135 + $0x570] sm:$0xff] %v888
        %1177 = vst [vmem:[%s135 + $0x578] sm:$0xff] %v889
        %1178 = vst [vmem:[%s135 + $0x580] sm:$0xff] %v890
        %1179 = vst [vmem:[%s135 + $0x588] sm:$0xff] %v891
        %1180 = vst [vmem:[%s135 + $0x590] sm:$0xff] %v892
        %1181 = vst [vmem:[%s135 + $0x598] sm:$0xff] %v893
        %1182 = vst [vmem:[%s135 + $0x5a0] sm:$0xff] %v894
        %1183 = vst [vmem:[%s135 + $0x5a8] sm:$0xff] %v895
        %1184 = vst [vmem:[%s135 + $0x5b0] sm:$0xff] %v896
        %1185 = vst [vmem:[%s135 + $0x5b8] sm:$0xff] %v897
        %1186 = vst [vmem:[%s135 + $0x5c0] sm:$0xff] %v898
        %1187 = vst [vmem:[%s135 + $0x5c8] sm:$0xff] %v899
        %1188 = vst [vmem:[%s135 + $0x5d0] sm:$0xff] %v900
        %1189 = vst [vmem:[%s135 + $0x5d8] sm:$0xff] %v901
        %1190 = vst [vmem:[%s135 + $0x5e0] sm:$0xff] %v902
        %1191 = vst [vmem:[%s135 + $0x5e8] sm:$0xff] %v903
        %1192 = vst [vmem:[%s135 + $0x5f0] sm:$0xff] %v904
        %1193 = vst [vmem:[%s135 + $0x5f8] sm:$0xff] %v905
        %1194 = vst [vmem:[%s135 + $0x600] sm:$0xff] %v906
        %1195 = vst [vmem:[%s135 + $0x608] sm:$0xff] %v907
        %1196 = vst [vmem:[%s135 + $0x610] sm:$0xff] %v908
        %1197 = vst [vmem:[%s135 + $0x618] sm:$0xff] %v909
        %1198 = vst [vmem:[%s135 + $0x620] sm:$0xff] %v910
        %1199 = vst [vmem:[%s135 + $0x628] sm:$0xff] %v911
        %1200 = vst [vmem:[%s135 + $0x630] sm:$0xff] %v912
        %1201 = vst [vmem:[%s135 + $0x638] sm:$0xff] %v913
        %1202 = vst [vmem:[%s135 + $0x640] sm:$0xff] %v914
        %1203 = vst [vmem:[%s135 + $0x648] sm:$0xff] %v915
        %1204 = vst [vmem:[%s135 + $0x650] sm:$0xff] %v916
        %1205 = vst [vmem:[%s135 + $0x658] sm:$0xff] %v917
        %1206 = vst [vmem:[%s135 + $0x660] sm:$0xff] %v918
        %1207 = vst [vmem:[%s135 + $0x668] sm:$0xff] %v919
        %1208 = vst [vmem:[%s135 + $0x670] sm:$0xff] %v920
        %1209 = vst [vmem:[%s135 + $0x678] sm:$0xff] %v921
        %1210 = vst [vmem:[%s135 + $0x680] sm:$0xff] %v922
        %1211 = vst [vmem:[%s135 + $0x688] sm:$0xff] %v923
        %1212 = vst [vmem:[%s135 + $0x690] sm:$0xff] %v924
        %1213 = vst [vmem:[%s135 + $0x698] sm:$0xff] %v925
        %1214 = vst [vmem:[%s135 + $0x6a0] sm:$0xff] %v926
        %1215 = vst [vmem:[%s135 + $0x6a8] sm:$0xff] %v927
        %1216 = vst [vmem:[%s135 + $0x6b0] sm:$0xff] %v928
        %1217 = vst [vmem:[%s135 + $0x6b8] sm:$0xff] %v929
        %1218 = vst [vmem:[%s135 + $0x6c0] sm:$0xff] %v930
        %1219 = vst [vmem:[%s135 + $0x6c8] sm:$0xff] %v931
        %1220 = vst [vmem:[%s135 + $0x6d0] sm:$0xff] %v932
        %1221 = vst [vmem:[%s135 + $0x6d8] sm:$0xff] %v933
        %1222 = vst [vmem:[%s135 + $0x6e0] sm:$0xff] %v934
        %1223 = vst [vmem:[%s135 + $0x6e8] sm:$0xff] %v935
        %1224 = vst [vmem:[%s135 + $0x6f0] sm:$0xff] %v936
        %1225 = vst [vmem:[%s135 + $0x6f8] sm:$0xff] %v937
        %1226 = vst [vmem:[%s135 + $0x700] sm:$0xff] %v938
        %1227 = vst [vmem:[%s135 + $0x708] sm:$0xff] %v939
        %1228 = vst [vmem:[%s135 + $0x710] sm:$0xff] %v940
        %1229 = vst [vmem:[%s135 + $0x718] sm:$0xff] %v941
        %1230 = vst [vmem:[%s135 + $0x720] sm:$0xff] %v942
        %1231 = vst [vmem:[%s135 + $0x728] sm:$0xff] %v943
        %1232 = vst [vmem:[%s135 + $0x730] sm:$0xff] %v944
        %1233 = vst [vmem:[%s135 + $0x738] sm:$0xff] %v945
        %1234 = vst [vmem:[%s135 + $0x740] sm:$0xff] %v946
        %1235 = vst [vmem:[%s135 + $0x748] sm:$0xff] %v947
        %1236 = vst [vmem:[%s135 + $0x750] sm:$0xff] %v948
        %1237 = vst [vmem:[%s135 + $0x758] sm:$0xff] %v949
        %1238 = vst [vmem:[%s135 + $0x760] sm:$0xff] %v950
        %1239 = vst [vmem:[%s135 + $0x768] sm:$0xff] %v951
        %1240 = vst [vmem:[%s135 + $0x770] sm:$0xff] %v952
        %1241 = vst [vmem:[%s135 + $0x778] sm:$0xff] %v953
        %1242 = vst [vmem:[%s135 + $0x780] sm:$0xff] %v954
        %1243 = vst [vmem:[%s135 + $0x788] sm:$0xff] %v955
        %1244 = vst [vmem:[%s135 + $0x790] sm:$0xff] %v956
        %1245 = vst [vmem:[%s135 + $0x798] sm:$0xff] %v957
        %1246 = vst [vmem:[%s135 + $0x7a0] sm:$0xff] %v958
        %1247 = vst [vmem:[%s135 + $0x7a8] sm:$0xff] %v959
        %1248 = vst [vmem:[%s135 + $0x7b0] sm:$0xff] %v960
        %1249 = vst [vmem:[%s135 + $0x7b8] sm:$0xff] %v961
        %1250 = vst [vmem:[%s135 + $0x7c0] sm:$0xff] %v962
        %1251 = vst [vmem:[%s135 + $0x7c8] sm:$0xff] %v963
        %1252 = vst [vmem:[%s135 + $0x7d0] sm:$0xff] %v964
        %1253 = vst [vmem:[%s135 + $0x7d8] sm:$0xff] %v965
        %1254 = vst [vmem:[%s135 + $0x7e0] sm:$0xff] %v966
        %1255 = vst [vmem:[%s135 + $0x7e8] sm:$0xff] %v967
        %1256 = vst [vmem:[%s135 + $0x7f0] sm:$0xff] %v968
        %1257 = vst [vmem:[%s135 + $0x7f8] sm:$0xff] %v969
        %1258 = vst [vmem:[%s135 + $0x800] sm:$0xff] %v970
        %1259 = vst [vmem:[%s135 + $0x808] sm:$0xff] %v971
        %1260 = vst [vmem:[%s135 + $0x810] sm:$0xff] %v972
        %1261 = vst [vmem:[%s135 + $0x818] sm:$0xff] %v973
        %1262 = vst [vmem:[%s135 + $0x820] sm:$0xff] %v974
        %1263 = vst [vmem:[%s135 + $0x828] sm:$0xff] %v975
        %1264 = vst [vmem:[%s135 + $0x830] sm:$0xff] %v976
        %1265 = vst [vmem:[%s135 + $0x838] sm:$0xff] %v977
        %1266 = vst [vmem:[%s135 + $0x840] sm:$0xff] %v978
        %1267 = vst [vmem:[%s135 + $0x848] sm:$0xff] %v979
        %1268 = vst [vmem:[%s135 + $0x850] sm:$0xff] %v980
        %1269 = vst [vmem:[%s135 + $0x858] sm:$0xff] %v981
        %1270 = vst [vmem:[%s135 + $0x860] sm:$0xff] %v982
        %1271 = vst [vmem:[%s135 + $0x868] sm:$0xff] %v983
        %1272 = vst [vmem:[%s135 + $0x870] sm:$0xff] %v984
        %1273 = vst [vmem:[%s135 + $0x878] sm:$0xff] %v985
        %1274 = vst [vmem:[%s135 + $0x880] sm:$0xff] %v986
        %1275 = vst [vmem:[%s135 + $0x888] sm:$0xff] %v987
        %1276 = vst [vmem:[%s135 + $0x890] sm:$0xff] %v988
        %1277 = vst [vmem:[%s135 + $0x898] sm:$0xff] %v989
        %1278 = vst [vmem:[%s135 + $0x8a0] sm:$0xff] %v990
        %1279 = vst [vmem:[%s135 + $0x8a8] sm:$0xff] %v991
        %1280 = vst [vmem:[%s135 + $0x8b0] sm:$0xff] %v992
        %1281 = vst [vmem:[%s135 + $0x8b8] sm:$0xff] %v993
        %1282 = vst [vmem:[%s135 + $0x8c0] sm:$0xff] %v994
        %1283 = vst [vmem:[%s135 + $0x8c8] sm:$0xff] %v995
        %1284 = vst [vmem:[%s135 + $0x8d0] sm:$0xff] %v996
        %1285 = vst [vmem:[%s135 + $0x8d8] sm:$0xff] %v997
        %1286 = vst [vmem:[%s135 + $0x8e0] sm:$0xff] %v998
        %1287 = vst [vmem:[%s135 + $0x8e8] sm:$0xff] %v999
        %1288 = vst [vmem:[%s135 + $0x8f0] sm:$0xff] %v1000
        %1289 = vst [vmem:[%s135 + $0x8f8] sm:$0xff] %v1001
        %s1290 = sand.u32 %s52, 1
        %s1291 = scalar_lea.sflag [#allocation4], %s1290
        %s1292 = sand.u32 %s52, 1
        %s1293 = smul.addr %s1292, 2304
        %s1294 = scalar_lea.vmem [#allocation5], %s1293
        // Predicated region
        $region29: #{tpu_custom_call.1} parent=23 // pred_check
          %p1295 = pneg %p62
        $region30: #{tpu_custom_call.1} parent=23 // pred_check_branch
          %1297 = sbr.rel (%p1295) target = $region32
        $region31: #{tpu_custom_call.1} parent=23 // pred_region
          %s1298 = smul.u32 9, %s18
          %s1300 = ssub.s32 36864, 36864
          %1301 = vsyncadd %s1291, %s1300
          %s1302 = smul.addr %s1298, 32
          %s1303 = smul.addr %s1302, 128
          %s1304 = scalar_lea.hbm %s1, %s1303
          %s1305 = sshll.u32 %s1294, 4
          %s1306 = int_to_ptr.vmem [resolvable:$true] %s1305
          %1311 = dma.vmem_to_hbm [thread:$0]  %s1306, 36864, %s1304, %s1291, 4096, 4096, 256
        $region32: #{tpu_custom_call.1} parent=23 // pred_fallthru
          _
      $region24: #{tpu_custom_call.1} parent=5 // pred_fallthru
        _
      %p1312 = scmp.le.s32.totalorder 2, %s13
      // Predicated region
      $region33: #{tpu_custom_call.1} parent=5 // pred_check
        %p1313 = pneg %p1312
      $region34: #{tpu_custom_call.1} parent=5 // pred_check_branch
        %1315 = sbr.rel (%p1313) target = $region36
      $region35: #{tpu_custom_call.1} parent=5 // pred_region
        %s1316 = ssub.s32 %s13, 2
        // Predicated region
        $region37: #{tpu_custom_call.1} parent=35 // pred_check
          %p1317 = pneg %p68
        $region38: #{tpu_custom_call.1} parent=35 // pred_check_branch
          %1319 = sbr.rel (%p1317) target = $region40
        $region39: #{tpu_custom_call.1} parent=35 // pred_region
          %s1320 = sand.u32 %s53, 1
          %s1321 = scalar_lea.sflag [#allocation4], %s1320
          %s1322 = sand.u32 %s53, 1
          %s1323 = smul.addr %s1322, 2304
          %s1324 = scalar_lea.vmem [#allocation5], %s1323
          %1325 = dma.done %s1321, 36864
        $region40: #{tpu_custom_call.1} parent=35 // pred_fallthru
          _
      $region36: #{tpu_custom_call.1} parent=5 // pred_fallthru
        _
    $region6: #{tpu_custom_call.1} parent=1 // loop_footer
      %s17 = sadd.s32 1, %s13
    $region7: #{tpu_custom_call.1} parent=1 // loop_footer_branch
      %12 = sbr.rel target = $region3
    $region8: #{tpu_custom_call.1} parent=1 // loop_exit
      _
    %1326 = vsyncpa [#allocation3], 1
    %s1327 = scalar_lea.sflag [#allocation3], 1
    %1328 = vsyncpa %s1327, 1
    %1329 = vsyncpa [#allocation4], 1
    %s1330 = scalar_lea.sflag [#allocation4], 1
    %1331 = vsyncpa %s1330, 1

</llo_original>
